<compile_context>
chip_gen: v6e
topology: v6e:2x2x1
jax: 0.10.0
libtpu: 0.0.40
codegen_flags: <defaults>
</compile_context>

<pallas_src>
import functools

import jax
import jax.numpy as jnp
from jax.experimental import pallas as pl
from jax.experimental.pallas import tpu as pltpu


HIDDEN = 128      # int(512 / 4)
C_PAD = 128       # lane-dense class dimension


def classifier_mlp_kernel(x_ref, w1_ref, b1_ref, w2_ref, b2_ref, o_ref):
    # Fused:  logits = relu(x @ W1 + b1) @ W2 + b2
    # Dropout is identity at inference; last=None -> no final activation.
    # Matmul inputs are bf16, accumulation and elementwise math are f32.
    h = jnp.dot(x_ref[...], w1_ref[...],
                preferred_element_type=jnp.float32)        # (TM, 128) f32
    h = jnp.maximum(h + b1_ref[...], 0.0)                  # bias + ReLU on VPU (f32)
    y = jnp.dot(h.astype(jnp.bfloat16), w2_ref[...],
                preferred_element_type=jnp.float32)        # (TM, 128) f32, lane-dense
    o_ref[...] = (y + b2_ref[...]).astype(o_ref.dtype)


def classifier_mlp(features, params, num_classes):
    """ClassifierMLP(512, num_classes, dropout, last=None) forward, eval mode.

    `params` hold bf16 weights already transposed to (fan_in, fan_out) and padded
    lane-dense: w1 (512,128) bf16, b1 (1,128) f32, w2 (128,128) bf16, b2 (1,128) f32.
    """
    w1, b1, w2, b2 = params
    B, D = features.shape

    # Pad batch to a sublane multiple; tile it with TM rows per grid step.
    TM = 128
    Bp = ((B + 7) // 8) * 8
    if Bp <= TM:
        TM = Bp
    else:
        Bp = ((Bp + TM - 1) // TM) * TM

    x = features
    if Bp != B:
        x = jnp.pad(x, ((0, Bp - B), (0, 0)))
    x = x.astype(jnp.bfloat16)

    grid = (Bp // TM,)

    flops = 2 * Bp * (D * HIDDEN + HIDDEN * C_PAD)
    bytes_accessed = (x.size * 2 + w1.size * 2 + w2.size * 2
                      + b1.size * 4 + b2.size * 4 + Bp * C_PAD * 4)

    out_padded = pl.pallas_call(
        classifier_mlp_kernel,
        out_shape=jax.ShapeDtypeStruct((Bp, C_PAD), jnp.float32),
        grid=grid,
        in_specs=[
            pl.BlockSpec((TM, D), lambda i: (i, 0)),         # x tile per grid step
            pl.BlockSpec((D, HIDDEN), lambda i: (0, 0)),     # weights resident
            pl.BlockSpec((1, HIDDEN), lambda i: (0, 0)),
            pl.BlockSpec((HIDDEN, C_PAD), lambda i: (0, 0)),
            pl.BlockSpec((1, C_PAD), lambda i: (0, 0)),
        ],
        out_specs=pl.BlockSpec((TM, C_PAD), lambda i: (i, 0)),
        compiler_params=pltpu.CompilerParams(
            dimension_semantics=("parallel",)),
        cost_estimate=pl.CostEstimate(
            flops=flops, transcendentals=0, bytes_accessed=bytes_accessed),
    )(x, w1, b1, w2, b2)

    # Strip batch padding and the lane padding of the class dimension.
    return out_padded[:B, :num_classes]


def init_params(key, input_size=512, num_classes=10):
    """nn.Linear default init U(-1/sqrt(fan_in), +1/sqrt(fan_in)); weights stored
    transposed (fan_in, fan_out), bf16, and padded lane-dense for the kernel."""
    hidden = input_size // 4  # 128
    k1, k2, k3, k4 = jax.random.split(key, 4)
    lim1 = 1.0 / jnp.sqrt(float(input_size))
    lim2 = 1.0 / jnp.sqrt(float(hidden))
    w1 = jax.random.uniform(k1, (input_size, hidden), jnp.float32, -lim1, lim1)
    b1 = jax.random.uniform(k2, (1, hidden), jnp.float32, -lim1, lim1)
    w2 = jax.random.uniform(k3, (hidden, num_classes), jnp.float32, -lim2, lim2)
    b2 = jax.random.uniform(k4, (1, num_classes), jnp.float32, -lim2, lim2)

    # Pad class dim to 128 lanes (zeros in lanes C..127) and cast weights to bf16.
    w2p = jnp.zeros((hidden, C_PAD), jnp.float32).at[:, :num_classes].set(w2)
    b2p = jnp.zeros((1, C_PAD), jnp.float32).at[:, :num_classes].set(b2)
    packed = (w1.astype(jnp.bfloat16), b1, w2p.astype(jnp.bfloat16), b2p)
    raw = (w1, b1, w2, b2)
    return packed, raw


@functools.partial(jax.jit, static_argnums=(2,))
def base_model_forward(features, params, num_classes):
    """BaseModel.forward in eval mode: predictions = C(G(input)).

    `features` is the 512-dim output of FeatureExtractor (see TODO above).
    Eval mode returns only `predictions` (training would also return f).
    """
    return classifier_mlp(features, params, num_classes)


if __name__ == "__main__":
    key = jax.random.PRNGKey(0)
    k_feat, k_param = jax.random.split(key)

    B = 8              # batch (already a sublane multiple -> no batch padding)
    FEAT = 512         # FeatureExtractor output dim (fixed by ClassifierMLP(512, ...))
    NUM_CLASSES = 10

    # Synthetic 512-dim features (stand-in for FeatureExtractor output).
    features = jax.random.normal(k_feat, (B, FEAT), dtype=jnp.float32)
    params, raw = init_params(k_param, input_size=FEAT, num_classes=NUM_CLASSES)

    preds = base_model_forward(features, params, NUM_CLASSES)
    preds = jax.block_until_ready(preds)
    assert preds.shape == (B, NUM_CLASSES)

    # Reference with the same bf16-input / f32-accumulation matmul semantics.
    w1, b1, w2, b2 = raw
    xb = features.astype(jnp.bfloat16)
    h = jnp.dot(xb, w1.astype(jnp.bfloat16), preferred_element_type=jnp.float32)
    h = jnp.maximum(h + b1, 0.0)
    ref = jnp.dot(h.astype(jnp.bfloat16), w2.astype(jnp.bfloat16),
                  preferred_element_type=jnp.float32) + b2
    assert jnp.allclose(preds, ref, atol=2e-3, rtol=2e-3), \
        float(jnp.max(jnp.abs(preds - ref)))

    # Sanity vs full-f32 math (loose tolerance for bf16 matmul inputs).
    ref32 = jnp.maximum(features @ w1 + b1, 0.0) @ w2 + b2
    assert jnp.allclose(preds, ref32, atol=5e-2, rtol=5e-2), \
        float(jnp.max(jnp.abs(preds - ref32)))

    print("KERNEL_OK")
</pallas_src>

<mosaic_0001>
module attributes {stable_mosaic.version = 11 : i64} {
  func.func @classifier_mlp_kernel(%arg0: i32, %arg1: memref<8x512xbf16, #tpu.memory_space<vmem>>, %arg2: memref<512x128xbf16, #tpu.memory_space<vmem>>, %arg3: memref<1x128xf32, #tpu.memory_space<vmem>>, %arg4: memref<128x128xbf16, #tpu.memory_space<vmem>>, %arg5: memref<1x128xf32, #tpu.memory_space<vmem>>, %arg6: memref<8x128xf32, #tpu.memory_space<vmem>>) attributes {dimension_semantics = [#tpu.dimension_semantics<parallel>], iteration_bounds = array<i64: 1>, scalar_prefetch = 0 : i64, scratch_operands = 0 : i64, tpu.core_type = #tpu.core_type<tc>, window_params = [{transform_indices = @transform_0, window_bounds = array<i64: 8, 512>}, {pipeline_mode = #tpu.pipeline_mode<synchronous>, transform_indices = @transform_1, window_bounds = array<i64: 512, 128>}, {pipeline_mode = #tpu.pipeline_mode<synchronous>, transform_indices = @transform_2, window_bounds = array<i64: 1, 128>}, {pipeline_mode = #tpu.pipeline_mode<synchronous>, transform_indices = @transform_3, window_bounds = array<i64: 128, 128>}, {pipeline_mode = #tpu.pipeline_mode<synchronous>, transform_indices = @transform_4, window_bounds = array<i64: 1, 128>}, {transform_indices = @transform_5, window_bounds = array<i64: 8, 128>}]} {
    %c0 = arith.constant 0 : index
    %c0_0 = arith.constant 0 : index
    %0 = vector.load %arg1[%c0, %c0_0] : memref<8x512xbf16, #tpu.memory_space<vmem>>, vector<8x512xbf16>
    %c0_1 = arith.constant 0 : index
    %c0_2 = arith.constant 0 : index
    %1 = vector.load %arg2[%c0_1, %c0_2] : memref<512x128xbf16, #tpu.memory_space<vmem>>, vector<512x128xbf16>
    %cst = arith.constant dense<0.000000e+00> : vector<8x128xf32>
    %2 = tpu.matmul %0, %1, %cst {dimension_numbers = #tpu.dot_dimension_numbers<[1], [0], [0], [1], [0, 0, 1, 1], [], []>} : vector<8x512xbf16>, vector<512x128xbf16>, vector<8x128xf32> -> vector<8x128xf32>
    %c0_3 = arith.constant 0 : index
    %c0_4 = arith.constant 0 : index
    %3 = vector.load %arg3[%c0_3, %c0_4] : memref<1x128xf32, #tpu.memory_space<vmem>>, vector<1x128xf32>
    %4 = vector.broadcast %3 : vector<1x128xf32> to vector<8x128xf32>
    %5 = arith.addf %2, %4 : vector<8x128xf32>
    %cst_5 = arith.constant 0.000000e+00 : f32
    %6 = vector.broadcast %cst_5 : f32 to vector<8x128xf32>
    %7 = arith.maximumf %5, %6 : vector<8x128xf32>
    %8 = arith.truncf %7 : vector<8x128xf32> to vector<8x128xbf16>
    %c0_6 = arith.constant 0 : index
    %c0_7 = arith.constant 0 : index
    %9 = vector.load %arg4[%c0_6, %c0_7] : memref<128x128xbf16, #tpu.memory_space<vmem>>, vector<128x128xbf16>
    %cst_8 = arith.constant dense<0.000000e+00> : vector<8x128xf32>
    %10 = tpu.matmul %8, %9, %cst_8 {dimension_numbers = #tpu.dot_dimension_numbers<[1], [0], [0], [1], [0, 0, 1, 1], [], []>} : vector<8x128xbf16>, vector<128x128xbf16>, vector<8x128xf32> -> vector<8x128xf32>
    %c0_9 = arith.constant 0 : index
    %c0_10 = arith.constant 0 : index
    %11 = vector.load %arg5[%c0_9, %c0_10] : memref<1x128xf32, #tpu.memory_space<vmem>>, vector<1x128xf32>
    %12 = vector.broadcast %11 : vector<1x128xf32> to vector<8x128xf32>
    %13 = arith.addf %10, %12 : vector<8x128xf32>
    %c0_11 = arith.constant 0 : index
    %c0_12 = arith.constant 0 : index
    %14 = vector.load %arg6[%c0_11, %c0_12] : memref<8x128xf32, #tpu.memory_space<vmem>>, vector<8x128xf32>
    tpu.vector_store %arg6[%c0_11, %c0_12], %13 {strides = array<i32>} : memref<8x128xf32, #tpu.memory_space<vmem>>, vector<8x128xf32>,
    return
  }
  func.func @transform_0(%arg0: i32) -> (i32, i32) {
    %c0_i32 = arith.constant 0 : i32
    %c0_i32_0 = arith.constant 0 : i32
    return %arg0, %c0_i32 : i32, i32
  }
  func.func @transform_1(%arg0: i32) -> (i32, i32) {
    %c0_i32 = arith.constant 0 : i32
    %c0_i32_0 = arith.constant 0 : i32
    %c0_i32_1 = arith.constant 0 : i32
    return %c0_i32, %c0_i32_0 : i32, i32
  }
  func.func @transform_2(%arg0: i32) -> (i32, i32) {
    %c0_i32 = arith.constant 0 : i32
    %c0_i32_0 = arith.constant 0 : i32
    %c0_i32_1 = arith.constant 0 : i32
    return %c0_i32, %c0_i32_0 : i32, i32
  }
  func.func @transform_3(%arg0: i32) -> (i32, i32) {
    %c0_i32 = arith.constant 0 : i32
    %c0_i32_0 = arith.constant 0 : i32
    %c0_i32_1 = arith.constant 0 : i32
    return %c0_i32, %c0_i32_0 : i32, i32
  }
  func.func @transform_4(%arg0: i32) -> (i32, i32) {
    %c0_i32 = arith.constant 0 : i32
    %c0_i32_0 = arith.constant 0 : i32
    %c0_i32_1 = arith.constant 0 : i32
    return %c0_i32, %c0_i32_0 : i32, i32
  }
  func.func @transform_5(%arg0: i32) -> (i32, i32) {
    %c0_i32 = arith.constant 0 : i32
    %c0_i32_0 = arith.constant 0 : i32
    return %arg0, %c0_i32 : i32, i32
  }
}

</mosaic_0001>

<llo_original>
// kernel: base_model_forward.1
$region0: #{base_model_forward.1}
  #allocation0 [shape = 'u32[]', space=smem, size = 0x4, offset = 0x4, fixed_abs, tag = 'smem constant byte address 0x4 - core index']
  #allocation1 [shape = 'u32[144,128]{1,0:T(1,128)}', space=vmem, size = 0x12000, scoped, tag = 'internal scratch']
  %s0 = inlined_call_operand.vmem [shape: bf16[8,512], index: 0, kind: input, shape index: {}]
  %s1 = inlined_call_operand.hbm [shape: bf16[512,128], index: 1, kind: input, shape index: {}]
  %s2 = inlined_call_operand.vmem [shape: f32[1,128], index: 2, kind: input, shape index: {}]
  %s3 = inlined_call_operand.hbm [shape: bf16[128,128], index: 3, kind: input, shape index: {}]
  %s4 = inlined_call_operand.vmem [shape: f32[1,128], index: 4, kind: input, shape index: {}]
  %s5 = inlined_call_operand.hbm [shape: f32[8,128], index: 5, kind: output, shape index: {}]
  %s6 = sld [smem:[#allocation0]]
  $region38: #{base_model_forward.1} parent=0
    _
  %s8 = ssub.s32 1, %s6
  %s9 = scalar_select 0, %s8, %s6
  $region1: #{base_model_forward.1} parent=0
    #allocation2 [shape = 'u8[131072]{0}', space=vmem, size = 0x20000, scoped, tag = 'input window, operand 1, single buffered']
    #allocation3 [shape = 's32[1]{0}', space=sflag, size = 0x4, scoped, tag = 'scoped memory for base_model_forward.1']
    #allocation4 [shape = 's32[1]{0}', space=sflag, size = 0x4, scoped, tag = 'scoped memory for base_model_forward.1']
    #allocation5 [shape = 'u8[32768]{0}', space=vmem, size = 0x8000, scoped, tag = 'input window, operand 3, single buffered']
    #allocation6 [shape = 's32[1]{0}', space=sflag, size = 0x4, scoped, tag = 'scoped memory for base_model_forward.1']
    #allocation7 [shape = 'u8[4096]{0}', space=vmem, size = 0x1000, scoped, tag = 'output window, operand 0, single buffered']
    %10 = vsyncpa [#allocation3], 0
    %11 = vsyncpa [#allocation6], 0
    %12 = vsyncpa [#allocation4], 0
    // Predicated region
    $region2: #{base_model_forward.1} parent=1 // pred_check
      _
    $region3: #{base_model_forward.1} parent=1 // pred_check_branch
      %14 = sbr.rel (0) target = $region5
    $region4: #{base_model_forward.1} parent=1 // pred_region
      _
    $region5: #{base_model_forward.1} parent=1 // pred_fallthru
      _
    // Predicated region
    $region6: #{base_model_forward.1} parent=1 // pred_check
      _
    $region7: #{base_model_forward.1} parent=1 // pred_check_branch
      %16 = sbr.rel (0) target = $region9
    $region8: #{base_model_forward.1} parent=1 // pred_region
      %s18 = ssub.s32 4096, 4096
      %19 = vsyncadd [#allocation3], %s18
      %s20 = sshll.u32 [#allocation2], 4
      %s21 = int_to_ptr.vmem [resolvable:$true] %s20
      %26 = dma.hbm_to_vmem [thread:$0]  %s1, 4096, %s21, [#allocation3], 64, 64, 4
    $region9: #{base_model_forward.1} parent=1 // pred_fallthru
      _
    // Predicated region
    $region10: #{base_model_forward.1} parent=1 // pred_check
      _
    $region11: #{base_model_forward.1} parent=1 // pred_check_branch
      %28 = sbr.rel (0) target = $region13
    $region12: #{base_model_forward.1} parent=1 // pred_region
      _
    $region13: #{base_model_forward.1} parent=1 // pred_fallthru
      _
    // Predicated region
    $region14: #{base_model_forward.1} parent=1 // pred_check
      _
    $region15: #{base_model_forward.1} parent=1 // pred_check_branch
      %30 = sbr.rel (0) target = $region17
    $region16: #{base_model_forward.1} parent=1 // pred_region
      %s32 = ssub.s32 1024, 1024
      %33 = vsyncadd [#allocation6], %s32
      %s34 = sshll.u32 [#allocation5], 4
      %s35 = int_to_ptr.vmem [resolvable:$true] %s34
      %40 = dma.hbm_to_vmem [thread:$0]  %s3, 1024, %s35, [#allocation6], 64, 64, 4
    $region17: #{base_model_forward.1} parent=1 // pred_fallthru
      _
    // Predicated region
    $region18: #{base_model_forward.1} parent=1 // pred_check
      _
    $region19: #{base_model_forward.1} parent=1 // pred_check_branch
      %42 = sbr.rel (0) target = $region21
    $region20: #{base_model_forward.1} parent=1 // pred_region
      _
    $region21: #{base_model_forward.1} parent=1 // pred_fallthru
      _
    // Predicated region
    $region22: #{base_model_forward.1} parent=1 // pred_check
      _
    $region23: #{base_model_forward.1} parent=1 // pred_check_branch
      %44 = sbr.rel (0) target = $region25
    $region24: #{base_model_forward.1} parent=1 // pred_region
      %45 = dma.done [#allocation3], 4096
    $region25: #{base_model_forward.1} parent=1 // pred_fallthru
      _
    // Predicated region
    $region26: #{base_model_forward.1} parent=1 // pred_check
      _
    $region27: #{base_model_forward.1} parent=1 // pred_check_branch
      %47 = sbr.rel (0) target = $region29
    $region28: #{base_model_forward.1} parent=1 // pred_region
      %48 = dma.done [#allocation6], 1024
    $region29: #{base_model_forward.1} parent=1 // pred_fallthru
      _
    %v50 = vld [vmem:[%s0] sm:$0xff]
    %v51 = vld [vmem:[%s0 + $0x8] sm:$0xff]
    %v52 = vld [vmem:[#allocation2] sm:$0xf]
    %v53 = vld [vmem:[#allocation2 + $0x4] sm:$0xf]
    %v54 = vld [vmem:[#allocation2 + $0x8] sm:$0xf]
    %v55 = vld [vmem:[#allocation2 + $0xc] sm:$0xf]
    %v56 = vld [vmem:[#allocation2 + $0x10] sm:$0xf]
    %v57 = vld [vmem:[#allocation2 + $0x14] sm:$0xf]
    %v58 = vld [vmem:[#allocation2 + $0x18] sm:$0xf]
    %v59 = vld [vmem:[#allocation2 + $0x1c] sm:$0xf]
    %v60 = vld [vmem:[#allocation2 + $0x20] sm:$0xf]
    %v61 = vld [vmem:[#allocation2 + $0x24] sm:$0xf]
    %v62 = vld [vmem:[#allocation2 + $0x28] sm:$0xf]
    %v63 = vld [vmem:[#allocation2 + $0x2c] sm:$0xf]
    %v64 = vld [vmem:[#allocation2 + $0x30] sm:$0xf]
    %v65 = vld [vmem:[#allocation2 + $0x34] sm:$0xf]
    %v66 = vld [vmem:[#allocation2 + $0x38] sm:$0xf]
    %v67 = vld [vmem:[#allocation2 + $0x3c] sm:$0xf]
    %v68 = vld [vmem:[#allocation2 + $0x40] sm:$0xf]
    %v69 = vld [vmem:[#allocation2 + $0x44] sm:$0xf]
    %v70 = vld [vmem:[#allocation2 + $0x48] sm:$0xf]
    %v71 = vld [vmem:[#allocation2 + $0x4c] sm:$0xf]
    %v72 = vld [vmem:[#allocation2 + $0x50] sm:$0xf]
    %v73 = vld [vmem:[#allocation2 + $0x54] sm:$0xf]
    %v74 = vld [vmem:[#allocation2 + $0x58] sm:$0xf]
    %v75 = vld [vmem:[#allocation2 + $0x5c] sm:$0xf]
    %v76 = vld [vmem:[#allocation2 + $0x60] sm:$0xf]
    %v77 = vld [vmem:[#allocation2 + $0x64] sm:$0xf]
    %v78 = vld [vmem:[#allocation2 + $0x68] sm:$0xf]
    %v79 = vld [vmem:[#allocation2 + $0x6c] sm:$0xf]
    %v80 = vld [vmem:[#allocation2 + $0x70] sm:$0xf]
    %v81 = vld [vmem:[#allocation2 + $0x74] sm:$0xf]
    %v82 = vld [vmem:[#allocation2 + $0x78] sm:$0xf]
    %v83 = vld [vmem:[#allocation2 + $0x7c] sm:$0xf]
    %v84 = vld [vmem:[#allocation2 + $0x80] sm:$0xf]
    %v85 = vld [vmem:[#allocation2 + $0x84] sm:$0xf]
    %v86 = vld [vmem:[#allocation2 + $0x88] sm:$0xf]
    %v87 = vld [vmem:[#allocation2 + $0x8c] sm:$0xf]
    %v88 = vld [vmem:[#allocation2 + $0x90] sm:$0xf]
    %v89 = vld [vmem:[#allocation2 + $0x94] sm:$0xf]
    %v90 = vld [vmem:[#allocation2 + $0x98] sm:$0xf]
    %v91 = vld [vmem:[#allocation2 + $0x9c] sm:$0xf]
    %v92 = vld [vmem:[#allocation2 + $0xa0] sm:$0xf]
    %v93 = vld [vmem:[#allocation2 + $0xa4] sm:$0xf]
    %v94 = vld [vmem:[#allocation2 + $0xa8] sm:$0xf]
    %v95 = vld [vmem:[#allocation2 + $0xac] sm:$0xf]
    %v96 = vld [vmem:[#allocation2 + $0xb0] sm:$0xf]
    %v97 = vld [vmem:[#allocation2 + $0xb4] sm:$0xf]
    %v98 = vld [vmem:[#allocation2 + $0xb8] sm:$0xf]
    %v99 = vld [vmem:[#allocation2 + $0xbc] sm:$0xf]
    %v100 = vld [vmem:[#allocation2 + $0xc0] sm:$0xf]
    %v101 = vld [vmem:[#allocation2 + $0xc4] sm:$0xf]
    %v102 = vld [vmem:[#allocation2 + $0xc8] sm:$0xf]
    %v103 = vld [vmem:[#allocation2 + $0xcc] sm:$0xf]
    %v104 = vld [vmem:[#allocation2 + $0xd0] sm:$0xf]
    %v105 = vld [vmem:[#allocation2 + $0xd4] sm:$0xf]
    %v106 = vld [vmem:[#allocation2 + $0xd8] sm:$0xf]
    %v107 = vld [vmem:[#allocation2 + $0xdc] sm:$0xf]
    %v108 = vld [vmem:[#allocation2 + $0xe0] sm:$0xf]
    %v109 = vld [vmem:[#allocation2 + $0xe4] sm:$0xf]
    %v110 = vld [vmem:[#allocation2 + $0xe8] sm:$0xf]
    %v111 = vld [vmem:[#allocation2 + $0xec] sm:$0xf]
    %v112 = vld [vmem:[#allocation2 + $0xf0] sm:$0xf]
    %v113 = vld [vmem:[#allocation2 + $0xf4] sm:$0xf]
    %v114 = vld [vmem:[#allocation2 + $0xf8] sm:$0xf]
    %v115 = vld [vmem:[#allocation2 + $0xfc] sm:$0xf]
    %v116 = vld [vmem:[%s2] sm:$0x1]
    %v118 = vlaneseq
    %v119 = vshrl.u32 %v118, 7
    %v120 = vsub.s32 0, %v119
    %v121 = vrot.slane %v116, %v120
    %v125 = vunpack.c.l.b16 %v50
    %v126 = vunpack.c.h.b16 %v50
    %v127 = vunpack.c.l.b16 %v51
    %v128 = vunpack.c.h.b16 %v51
    %v129 = vpack.c.b16 %v125, %v125
    %v130 = vpack.c.b16 %v126, %v126
    %v131 = vpack.c.b16 %v127, %v127
    %v132 = vpack.c.b16 %v128, %v128
    %v201 = vunpack.c.l.b16 %v52
    %v202 = vunpack.c.l.b16 %v53
    %v203 = vunpack.c.l.b16 %v54
    %v204 = vunpack.c.l.b16 %v55
    %v205 = vunpack.c.l.b16 %v56
    %v206 = vunpack.c.l.b16 %v57
    %v207 = vunpack.c.l.b16 %v58
    %v208 = vunpack.c.l.b16 %v59
    %v209 = vunpack.c.l.b16 %v60
    %v210 = vunpack.c.l.b16 %v61
    %v211 = vunpack.c.l.b16 %v62
    %v212 = vunpack.c.l.b16 %v63
    %v213 = vunpack.c.l.b16 %v64
    %v214 = vunpack.c.l.b16 %v65
    %v215 = vunpack.c.l.b16 %v66
    %v216 = vunpack.c.l.b16 %v67
    %v217 = vunpack.c.l.b16 %v68
    %v218 = vunpack.c.l.b16 %v69
    %v219 = vunpack.c.l.b16 %v70
    %v220 = vunpack.c.l.b16 %v71
    %v221 = vunpack.c.l.b16 %v72
    %v222 = vunpack.c.l.b16 %v73
    %v223 = vunpack.c.l.b16 %v74
    %v224 = vunpack.c.l.b16 %v75
    %v225 = vunpack.c.l.b16 %v76
    %v226 = vunpack.c.l.b16 %v77
    %v227 = vunpack.c.l.b16 %v78
    %v228 = vunpack.c.l.b16 %v79
    %v229 = vunpack.c.l.b16 %v80
    %v230 = vunpack.c.l.b16 %v81
    %v231 = vunpack.c.l.b16 %v82
    %v232 = vunpack.c.l.b16 %v83
    %v233 = vunpack.c.l.b16 %v84
    %v234 = vunpack.c.l.b16 %v85
    %v235 = vunpack.c.l.b16 %v86
    %v236 = vunpack.c.l.b16 %v87
    %v237 = vunpack.c.l.b16 %v88
    %v238 = vunpack.c.l.b16 %v89
    %v239 = vunpack.c.l.b16 %v90
    %v240 = vunpack.c.l.b16 %v91
    %v241 = vunpack.c.l.b16 %v92
    %v242 = vunpack.c.l.b16 %v93
    %v243 = vunpack.c.l.b16 %v94
    %v244 = vunpack.c.l.b16 %v95
    %v245 = vunpack.c.l.b16 %v96
    %v246 = vunpack.c.l.b16 %v97
    %v247 = vunpack.c.l.b16 %v98
    %v248 = vunpack.c.l.b16 %v99
    %v249 = vunpack.c.l.b16 %v100
    %v250 = vunpack.c.l.b16 %v101
    %v251 = vunpack.c.l.b16 %v102
    %v252 = vunpack.c.l.b16 %v103
    %v253 = vunpack.c.l.b16 %v104
    %v254 = vunpack.c.l.b16 %v105
    %v255 = vunpack.c.l.b16 %v106
    %v256 = vunpack.c.l.b16 %v107
    %v257 = vunpack.c.l.b16 %v108
    %v258 = vunpack.c.l.b16 %v109
    %v259 = vunpack.c.l.b16 %v110
    %v260 = vunpack.c.l.b16 %v111
    %v261 = vunpack.c.l.b16 %v112
    %v262 = vunpack.c.l.b16 %v113
    %v263 = vunpack.c.l.b16 %v114
    %v264 = vunpack.c.l.b16 %v115
    %v265 = vpack.c.b16 %v202, %v201
    %v266 = vpack.c.b16 %v204, %v203
    %v267 = vpack.c.b16 %v206, %v205
    %v268 = vpack.c.b16 %v208, %v207
    %v269 = vpack.c.b16 %v210, %v209
    %v270 = vpack.c.b16 %v212, %v211
    %v271 = vpack.c.b16 %v214, %v213
    %v272 = vpack.c.b16 %v216, %v215
    %v273 = vpack.c.b16 %v218, %v217
    %v274 = vpack.c.b16 %v220, %v219
    %v275 = vpack.c.b16 %v222, %v221
    %v276 = vpack.c.b16 %v224, %v223
    %v277 = vpack.c.b16 %v226, %v225
    %v278 = vpack.c.b16 %v228, %v227
    %v279 = vpack.c.b16 %v230, %v229
    %v280 = vpack.c.b16 %v232, %v231
    %v281 = vpack.c.b16 %v234, %v233
    %v282 = vpack.c.b16 %v236, %v235
    %v283 = vpack.c.b16 %v238, %v237
    %v284 = vpack.c.b16 %v240, %v239
    %v285 = vpack.c.b16 %v242, %v241
    %v286 = vpack.c.b16 %v244, %v243
    %v287 = vpack.c.b16 %v246, %v245
    %v288 = vpack.c.b16 %v248, %v247
    %v289 = vpack.c.b16 %v250, %v249
    %v290 = vpack.c.b16 %v252, %v251
    %v291 = vpack.c.b16 %v254, %v253
    %v292 = vpack.c.b16 %v256, %v255
    %v293 = vpack.c.b16 %v258, %v257
    %v294 = vpack.c.b16 %v260, %v259
    %v295 = vpack.c.b16 %v262, %v261
    %v296 = vpack.c.b16 %v264, %v263
    %329 = vmatprep.subr.bf16.mxu0 0
    %330 = vmatpush1.bf16.msra.mxu0 %v272
    %331 = vmatprep.subr.bf16.mxu0 0
    %332 = vmatpush1.bf16.msra.mxu0 %v271
    %333 = vmatprep.subr.bf16.mxu0 0
    %334 = vmatpush1.bf16.msra.mxu0 %v270
    %335 = vmatprep.subr.bf16.mxu0 0
    %336 = vmatpush1.bf16.msra.mxu0 %v269
    %337 = vmatprep.subr.bf16.mxu0 0
    %338 = vmatpush1.bf16.msra.mxu0 %v268
    %339 = vmatprep.subr.bf16.mxu0 0
    %340 = vmatpush1.bf16.msra.mxu0 %v267
    %341 = vmatprep.subr.bf16.mxu0 0
    %342 = vmatpush1.bf16.msra.mxu0 %v266
    %343 = vmatprep.subr.bf16.mxu0 0
    %344 = vmatpush1.bf16.msra.mxu0 %v265
    %345 = vmatprep.subr.bf16.mxu0 0
    %346 = vmatpush2.bf16.msra.mxu0 %v280
    %347 = vmatprep.subr.bf16.mxu0 0
    %348 = vmatpush2.bf16.msra.mxu0 %v279
    %349 = vmatprep.subr.bf16.mxu0 0
    %350 = vmatpush2.bf16.msra.mxu0 %v278
    %351 = vmatprep.subr.bf16.mxu0 0
    %352 = vmatpush2.bf16.msra.mxu0 %v277
    %353 = vmatprep.subr.bf16.mxu0 0
    %354 = vmatpush2.bf16.msra.mxu0 %v276
    %355 = vmatprep.subr.bf16.mxu0 0
    %356 = vmatpush2.bf16.msra.mxu0 %v275
    %357 = vmatprep.subr.bf16.mxu0 0
    %358 = vmatpush2.bf16.msra.mxu0 %v274
    %359 = vmatprep.subr.bf16.mxu0 0
    %360 = vmatpush2.bf16.msra.mxu0 %v273
    %361 = vmatprep.mubr.bf16.mxu0 %v130
    %362 = vmatmul.mubr.bf16.gmra.mxu0 %v129
    %v363 = vpop.f32.mrf.mxu0
    %v364 = vadd.f32 %v121, %v363
    %v365 = vpop.f32.mrf.mxu0
    %v366 = vpop.f32.mrf.mxu0
    %v367 = vpop.f32.mrf.mxu0
    %368 = vdwg.mxu0
    %369 = vmatprep.subr.bf16.mxu0 0
    %370 = vmatpush1.bf16.msra.mxu0 %v288
    %371 = vmatprep.subr.bf16.mxu0 0
    %372 = vmatpush1.bf16.msra.mxu0 %v287
    %373 = vmatprep.subr.bf16.mxu0 0
    %374 = vmatpush1.bf16.msra.mxu0 %v286
    %375 = vmatprep.subr.bf16.mxu0 0
    %376 = vmatpush1.bf16.msra.mxu0 %v285
    %377 = vmatprep.subr.bf16.mxu0 0
    %378 = vmatpush1.bf16.msra.mxu0 %v284
    %379 = vmatprep.subr.bf16.mxu0 0
    %380 = vmatpush1.bf16.msra.mxu0 %v283
    %381 = vmatprep.subr.bf16.mxu0 0
    %382 = vmatpush1.bf16.msra.mxu0 %v282
    %383 = vmatprep.subr.bf16.mxu0 0
    %384 = vmatpush1.bf16.msra.mxu0 %v281
    %385 = vmatprep.subr.bf16.mxu0 0
    %386 = vmatpush2.bf16.msra.mxu0 %v296
    %387 = vmatprep.subr.bf16.mxu0 0
    %388 = vmatpush2.bf16.msra.mxu0 %v295
    %389 = vmatprep.subr.bf16.mxu0 0
    %390 = vmatpush2.bf16.msra.mxu0 %v294
    %391 = vmatprep.subr.bf16.mxu0 0
    %392 = vmatpush2.bf16.msra.mxu0 %v293
    %393 = vmatprep.subr.bf16.mxu0 0
    %394 = vmatpush2.bf16.msra.mxu0 %v292
    %395 = vmatprep.subr.bf16.mxu0 0
    %396 = vmatpush2.bf16.msra.mxu0 %v291
    %397 = vmatprep.subr.bf16.mxu0 0
    %398 = vmatpush2.bf16.msra.mxu0 %v290
    %399 = vmatprep.subr.bf16.mxu0 0
    %400 = vmatpush2.bf16.msra.mxu0 %v289
    %401 = vmatprep.mubr.bf16.mxu0 %v132
    %402 = vmatmul.mubr.bf16.gmra.mxu0 %v131
    %v403 = vpop.f32.mrf.mxu0
    %v404 = vadd.f32 %v364, %v403
    %v405 = vpop.f32.mrf.mxu0
    %v406 = vpop.f32.mrf.mxu0
    %v407 = vpop.f32.mrf.mxu0
    %408 = vdwg.mxu0
    %v409 = vmax.f32 %v404, 0.0
    %v410 = vpack.c.bf16 %v409, %v409
    %v411 = vld [vmem:[#allocation5] sm:$0xf]
    %v412 = vld [vmem:[#allocation5 + $0x4] sm:$0xf]
    %v413 = vld [vmem:[#allocation5 + $0x8] sm:$0xf]
    %v414 = vld [vmem:[#allocation5 + $0xc] sm:$0xf]
    %v415 = vld [vmem:[#allocation5 + $0x10] sm:$0xf]
    %v416 = vld [vmem:[#allocation5 + $0x14] sm:$0xf]
    %v417 = vld [vmem:[#allocation5 + $0x18] sm:$0xf]
    %v418 = vld [vmem:[#allocation5 + $0x1c] sm:$0xf]
    %v419 = vld [vmem:[#allocation5 + $0x20] sm:$0xf]
    %v420 = vld [vmem:[#allocation5 + $0x24] sm:$0xf]
    %v421 = vld [vmem:[#allocation5 + $0x28] sm:$0xf]
    %v422 = vld [vmem:[#allocation5 + $0x2c] sm:$0xf]
    %v423 = vld [vmem:[#allocation5 + $0x30] sm:$0xf]
    %v424 = vld [vmem:[#allocation5 + $0x34] sm:$0xf]
    %v425 = vld [vmem:[#allocation5 + $0x38] sm:$0xf]
    %v426 = vld [vmem:[#allocation5 + $0x3c] sm:$0xf]
    %v427 = vld [vmem:[%s4] sm:$0x1]
    %v429 = vlaneseq
    %v430 = vshrl.u32 %v429, 7
    %v431 = vsub.s32 0, %v430
    %v432 = vrot.slane %v427, %v431
    %v450 = vunpack.c.l.b16 %v411
    %v451 = vunpack.c.l.b16 %v412
    %v452 = vunpack.c.l.b16 %v413
    %v453 = vunpack.c.l.b16 %v414
    %v454 = vunpack.c.l.b16 %v415
    %v455 = vunpack.c.l.b16 %v416
    %v456 = vunpack.c.l.b16 %v417
    %v457 = vunpack.c.l.b16 %v418
    %v458 = vunpack.c.l.b16 %v419
    %v459 = vunpack.c.l.b16 %v420
    %v460 = vunpack.c.l.b16 %v421
    %v461 = vunpack.c.l.b16 %v422
    %v462 = vunpack.c.l.b16 %v423
    %v463 = vunpack.c.l.b16 %v424
    %v464 = vunpack.c.l.b16 %v425
    %v465 = vunpack.c.l.b16 %v426
    %v466 = vpack.c.b16 %v451, %v450
    %v467 = vpack.c.b16 %v453, %v452
    %v468 = vpack.c.b16 %v455, %v454
    %v469 = vpack.c.b16 %v457, %v456
    %v470 = vpack.c.b16 %v459, %v458
    %v471 = vpack.c.b16 %v461, %v460
    %v472 = vpack.c.b16 %v463, %v462
    %v473 = vpack.c.b16 %v465, %v464
    %482 = vmatprep.subr.bf16.mxu0 0
    %483 = vmatpush1.bf16.msra.mxu0 %v473
    %484 = vmatprep.subr.bf16.mxu0 0
    %485 = vmatpush1.bf16.msra.mxu0 %v472
    %486 = vmatprep.subr.bf16.mxu0 0
    %487 = vmatpush1.bf16.msra.mxu0 %v471
    %488 = vmatprep.subr.bf16.mxu0 0
    %489 = vmatpush1.bf16.msra.mxu0 %v470
    %490 = vmatprep.subr.bf16.mxu0 0
    %491 = vmatpush1.bf16.msra.mxu0 %v469
    %492 = vmatprep.subr.bf16.mxu0 0
    %493 = vmatpush1.bf16.msra.mxu0 %v468
    %494 = vmatprep.subr.bf16.mxu0 0
    %495 = vmatpush1.bf16.msra.mxu0 %v467
    %496 = vmatprep.subr.bf16.mxu0 0
    %497 = vmatpush1.bf16.msra.mxu0 %v466
    %498 = vmatprep.subr.bf16.mxu0 0
    %499 = vmatpush2.bf16.msra.mxu0 0
    %500 = vmatprep.subr.bf16.mxu0 0
    %501 = vmatpush2.bf16.msra.mxu0 0
    %502 = vmatprep.subr.bf16.mxu0 0
    %503 = vmatpush2.bf16.msra.mxu0 0
    %504 = vmatprep.subr.bf16.mxu0 0
    %505 = vmatpush2.bf16.msra.mxu0 0
    %506 = vmatprep.subr.bf16.mxu0 0
    %507 = vmatpush2.bf16.msra.mxu0 0
    %508 = vmatprep.subr.bf16.mxu0 0
    %509 = vmatpush2.bf16.msra.mxu0 0
    %510 = vmatprep.subr.bf16.mxu0 0
    %511 = vmatpush2.bf16.msra.mxu0 0
    %512 = vmatprep.subr.bf16.mxu0 0
    %513 = vmatpush2.bf16.msra.mxu0 0
    %514 = vmatprep.mubr.bf16.mxu0 0
    %515 = vmatmul.mubr.bf16.gmra.mxu0 %v410
    %v516 = vpop.f32.mrf.mxu0
    %v517 = vadd.f32 %v432, %v516
    %v518 = vpop.f32.mrf.mxu0
    %v519 = vpop.f32.mrf.mxu0
    %v520 = vpop.f32.mrf.mxu0
    %521 = vdwg.mxu0
    %522 = vst [vmem:[#allocation7] sm:$0xff] %v517
    // Predicated region
    $region30: #{base_model_forward.1} parent=1 // pred_check
      _
    $region31: #{base_model_forward.1} parent=1 // pred_check_branch
      %524 = sbr.rel (0) target = $region33
    $region32: #{base_model_forward.1} parent=1 // pred_region
      %s526 = ssub.s32 128, 128
      %527 = vsyncadd [#allocation4], %s526
      %s529 = sshll.u32 [#allocation7], 4
      %s530 = int_to_ptr.vmem [resolvable:$true] %s529
      %532 = dma.vmem_to_hbm [thread:$0]  %s530, 128, %s5, [#allocation4]
    $region33: #{base_model_forward.1} parent=1 // pred_fallthru
      _
    // Predicated region
    $region34: #{base_model_forward.1} parent=1 // pred_check
      _
    $region35: #{base_model_forward.1} parent=1 // pred_check_branch
      %534 = sbr.rel (0) target = $region37
    $region36: #{base_model_forward.1} parent=1 // pred_region
      %535 = dma.done [#allocation4], 128
    $region37: #{base_model_forward.1} parent=1 // pred_fallthru
      _
    %536 = vsyncpa [#allocation3], 1
    %537 = vsyncpa [#allocation6], 1
    %538 = vsyncpa [#allocation4], 1

</llo_original>
